<compile_context>
chip_gen: v6e
topology: v6e:2x2x1
jax: 0.10.0
libtpu: 0.0.40
codegen_flags: <defaults>
</compile_context>

<pallas_src>
import functools

import jax
import jax.numpy as jnp
from jax.experimental import pallas as pl
from jax.experimental.pallas import tpu as pltpu


# ----------------------------- Pallas kernel -------------------------------
def _net_kernel(x_ref, wcat_ref, w2_ref, wout_ref, bvec_ref, y_ref,
                *, Dy, H1, H2):
    x = x_ref[...]                                     # bf16 [tb, Din]

    # Fused first matmul: [lin | pre1] = x @ [w_lin | w1*s1]  (f32 accumulate)
    z = jnp.dot(x, wcat_ref[...], preferred_element_type=jnp.float32)
    lin = z[:, :Dy]                                    # lane slice, stays in-vreg
    pre1 = z[:, Dy:]

    # Packed bias/shift vector: [c1 | c2 | b_lin + b_out]
    bv = bvec_ref[...]
    c1 = bv[:, :H1]
    c2 = bv[:, H1:H1 + H2]
    b_fin = bv[:, H1 + H2:]

    # block 1: (Linear+BN folded) -> ReLU -> Dropout
    # TODO(synk): Dropout(p=0.2) is identity at inference; no PRNG mask applied.
    h1 = jnp.maximum(pre1 + c1, 0.0)

    # block 2: (Linear+BN folded) -> ReLU -> Dropout
    h2 = jnp.dot(h1.astype(w2_ref.dtype), w2_ref[...],
                 preferred_element_type=jnp.float32) + c2
    h2 = jnp.maximum(h2, 0.0)

    # final Linear (bias merged with b_lin into b_fin)
    mlp = jnp.dot(h2.astype(wout_ref.dtype), wout_ref[...],
                  preferred_element_type=jnp.float32)

    y_ref[...] = (lin + mlp + b_fin).astype(y_ref.dtype)


# --------------------- parameter folding / packing --------------------------
def fold_params(params):
    """Fold BN into the Linears, fuse lin into matmul 1, pack biases."""
    w1f = params["w1"] * params["s1"]                       # [Din, H1]
    c1 = params["b1"] * params["s1"] + params["t1"]         # [1, H1]
    w2f = params["w2"] * params["s2"]                       # [H1, H2]
    c2 = params["b2"] * params["s2"] + params["t2"]         # [1, H2]
    b_fin = params["b_lin"] + params["b_out"]               # [1, Dy]

    wcat = jnp.concatenate([params["w_lin"], w1f], axis=1)  # [Din, Dy+H1]
    bvec = jnp.concatenate([c1, c2, b_fin], axis=1)         # [1, H1+H2+Dy]

    return dict(
        wcat=wcat.astype(jnp.bfloat16),
        w2=w2f.astype(jnp.bfloat16),
        w_out=params["w_out"].astype(jnp.bfloat16),
        bvec=bvec.astype(jnp.float32),
        sig=params["sig"],
        dims=(params["w_lin"].shape[1], params["w1"].shape[1],
              params["w2"].shape[1]),                       # (Dy, H1, H2)
    )


# ------------------------------- wrapper ------------------------------------
def net_forward(x, folded, *, tb=None):
    B, Din = x.shape
    Dy, H1, H2 = folded["dims"]

    # Batch tile: single tile for small B; cap at 512 rows for large B so the
    # grid has >=2 parallel steps (megacore on v7x) and tiles stay well within
    # v7x's 64 MiB VMEM (weights here are tiny and resident).
    if tb is None:
        tb = B if B <= 512 else 512
        while B % tb != 0:
            tb //= 2
    grid = (B // tb,)

    kernel = functools.partial(_net_kernel, Dy=Dy, H1=H1, H2=H2)

    y = pl.pallas_call(
        kernel,
        grid=grid,
        in_specs=[
            pl.BlockSpec((tb, Din), lambda i: (i, 0)),            # x
            pl.BlockSpec((Din, Dy + H1), lambda i: (0, 0)),       # [w_lin | w1']
            pl.BlockSpec((H1, H2), lambda i: (0, 0)),             # w2'
            pl.BlockSpec((H2, Dy), lambda i: (0, 0)),             # w_out
            pl.BlockSpec((1, H1 + H2 + Dy), lambda i: (0, 0)),    # packed biases
        ],
        out_specs=pl.BlockSpec((tb, Dy), lambda i: (i, 0)),
        out_shape=jax.ShapeDtypeStruct((B, Dy), jnp.float32),
        compiler_params=pltpu.CompilerParams(
            dimension_semantics=("parallel",)),
    )(x.astype(jnp.bfloat16),
      folded["wcat"], folded["w2"], folded["w_out"], folded["bvec"])

    # sig.expand(B, Dy) is independent of x -> plain broadcast in the wrapper.
    sig = jnp.broadcast_to(folded["sig"], (B, Dy)).astype(jnp.float32)
    return y, sig


# ------------------------ deterministic parameter setup ---------------------
def init_params(key, Din, Dy, hidden=(32, 32), n_fit=64):
    ks = jax.random.split(key, 12)

    # Mimic __init__: solve least squares (X_^T X_) Theta = X_^T Y.
    Xf = jax.random.normal(ks[0], (n_fit, Din), jnp.float32)
    Yf = jax.random.normal(ks[1], (n_fit, Dy), jnp.float32)
    X_ = jnp.concatenate([Xf, jnp.ones((n_fit, 1), jnp.float32)], axis=1)
    Theta = jnp.linalg.solve(X_.T @ X_, X_.T @ Yf)          # (Din+1, Dy)
    w_lin = Theta[:-1, :]                                   # == pytorch W.T
    b_lin = Theta[-1:, :]                                   # (1, Dy)

    H1, H2 = hidden
    eps = 1e-5

    def dense(k, din, dout):
        scale = 1.0 / jnp.sqrt(jnp.float32(din))
        w = jax.random.uniform(k, (din, dout), jnp.float32, -scale, scale)
        b = jax.random.uniform(jax.random.fold_in(k, 1), (1, dout),
                               jnp.float32, -scale, scale)
        return w, b

    def bn(k, d):
        gamma = 1.0 + 0.1 * jax.random.normal(k, (1, d), jnp.float32)
        beta = 0.1 * jax.random.normal(jax.random.fold_in(k, 1), (1, d), jnp.float32)
        rmean = 0.1 * jax.random.normal(jax.random.fold_in(k, 2), (1, d), jnp.float32)
        rvar = 1.0 + 0.1 * jax.random.uniform(jax.random.fold_in(k, 3), (1, d),
                                              jnp.float32)
        s = gamma / jnp.sqrt(rvar + eps)        # folded scale
        t = beta - rmean * s                    # folded shift
        return s, t

    w1, b1 = dense(ks[2], Din, H1)
    s1, t1 = bn(ks[3], H1)
    w2, b2 = dense(ks[4], H1, H2)
    s2, t2 = bn(ks[5], H2)
    w_out, b_out = dense(ks[6], H2, Dy)

    sig = jnp.ones((1, Dy), jnp.float32)        # Parameter(torch.ones(1, Dy))

    return dict(w_lin=w_lin, b_lin=b_lin,
                w1=w1, b1=b1, s1=s1, t1=t1,
                w2=w2, b2=b2, s2=s2, t2=t2,
                w_out=w_out, b_out=b_out, sig=sig)


# --------------------------- pure-JAX reference ------------------------------
def net_forward_ref(x, p):
    lin = x @ p["w_lin"] + p["b_lin"]
    h = jnp.maximum((x @ p["w1"] + p["b1"]) * p["s1"] + p["t1"], 0.0)
    h = jnp.maximum((h @ p["w2"] + p["b2"]) * p["s2"] + p["t2"], 0.0)
    mlp = h @ p["w_out"] + p["b_out"]
    y = lin + mlp
    sig = jnp.broadcast_to(p["sig"], (x.shape[0], p["sig"].shape[1]))
    return y, sig


if __name__ == "__main__":
    B, Din, Dy = 8, 16, 4
    hidden = (32, 32)

    key = jax.random.PRNGKey(0)
    kx, kp = jax.random.split(key)
    params = init_params(kp, Din, Dy, hidden=hidden)
    x = jax.random.normal(kx, (B, Din), jnp.float32)

    folded = fold_params(params)
    y, sig = net_forward(x, folded)
    jax.block_until_ready((y, sig))

    y_ref, sig_ref = net_forward_ref(x, params)
    assert y.shape == (B, Dy) and sig.shape == (B, Dy)
    assert jnp.allclose(y, y_ref, atol=2e-2, rtol=2e-2)
    assert jnp.allclose(sig, sig_ref)

    print("KERNEL_OK")
</pallas_src>

<mosaic_0001>
module attributes {stable_mosaic.version = 11 : i64} {
  func.func @_net_kernel(%arg0: i32, %arg1: memref<8x16xbf16, #tpu.memory_space<vmem>>, %arg2: memref<16x36xbf16, #tpu.memory_space<vmem>>, %arg3: memref<32x32xbf16, #tpu.memory_space<vmem>>, %arg4: memref<32x4xbf16, #tpu.memory_space<vmem>>, %arg5: memref<1x68xf32, #tpu.memory_space<vmem>>, %arg6: memref<8x4xf32, #tpu.memory_space<vmem>>) attributes {dimension_semantics = [#tpu.dimension_semantics<parallel>], iteration_bounds = array<i64: 1>, scalar_prefetch = 0 : i64, scratch_operands = 0 : i64, tpu.core_type = #tpu.core_type<tc>, window_params = [{transform_indices = @transform_0, window_bounds = array<i64: 8, 16>}, {pipeline_mode = #tpu.pipeline_mode<synchronous>, transform_indices = @transform_1, window_bounds = array<i64: 16, 36>}, {pipeline_mode = #tpu.pipeline_mode<synchronous>, transform_indices = @transform_2, window_bounds = array<i64: 32, 32>}, {pipeline_mode = #tpu.pipeline_mode<synchronous>, transform_indices = @transform_3, window_bounds = array<i64: 32, 4>}, {pipeline_mode = #tpu.pipeline_mode<synchronous>, transform_indices = @transform_4, window_bounds = array<i64: 1, 68>}, {transform_indices = @transform_5, window_bounds = array<i64: 8, 4>}]} {
    %c0 = arith.constant 0 : index
    %c0_0 = arith.constant 0 : index
    %0 = vector.load %arg1[%c0, %c0_0] : memref<8x16xbf16, #tpu.memory_space<vmem>>, vector<8x16xbf16>
    %c0_1 = arith.constant 0 : index
    %c0_2 = arith.constant 0 : index
    %1 = vector.load %arg2[%c0_1, %c0_2] : memref<16x36xbf16, #tpu.memory_space<vmem>>, vector<16x36xbf16>
    %cst = arith.constant dense<0.000000e+00> : vector<8x36xf32>
    %2 = tpu.matmul %0, %1, %cst {dimension_numbers = #tpu.dot_dimension_numbers<[1], [0], [0], [1], [0, 0, 1, 1], [], []>} : vector<8x16xbf16>, vector<16x36xbf16>, vector<8x36xf32> -> vector<8x36xf32>
    %3 = vector.extract_strided_slice %2 {offsets = [0, 0], sizes = [8, 4], strides = [1, 1]} : vector<8x36xf32> to vector<8x4xf32>
    %4 = vector.extract_strided_slice %2 {offsets = [0, 4], sizes = [8, 32], strides = [1, 1]} : vector<8x36xf32> to vector<8x32xf32>
    %c0_3 = arith.constant 0 : index
    %c0_4 = arith.constant 0 : index
    %5 = vector.load %arg5[%c0_3, %c0_4] : memref<1x68xf32, #tpu.memory_space<vmem>>, vector<1x68xf32>
    %6 = vector.extract_strided_slice %5 {offsets = [0, 0], sizes = [1, 32], strides = [1, 1]} : vector<1x68xf32> to vector<1x32xf32>
    %7 = vector.extract_strided_slice %5 {offsets = [0, 32], sizes = [1, 32], strides = [1, 1]} : vector<1x68xf32> to vector<1x32xf32>
    %8 = vector.extract_strided_slice %5 {offsets = [0, 64], sizes = [1, 4], strides = [1, 1]} : vector<1x68xf32> to vector<1x4xf32>
    %9 = vector.broadcast %6 : vector<1x32xf32> to vector<8x32xf32>
    %10 = arith.addf %4, %9 : vector<8x32xf32>
    %cst_5 = arith.constant 0.000000e+00 : f32
    %11 = vector.broadcast %cst_5 : f32 to vector<8x32xf32>
    %12 = arith.maximumf %10, %11 : vector<8x32xf32>
    %13 = arith.truncf %12 : vector<8x32xf32> to vector<8x32xbf16>
    %c0_6 = arith.constant 0 : index
    %c0_7 = arith.constant 0 : index
    %14 = vector.load %arg3[%c0_6, %c0_7] : memref<32x32xbf16, #tpu.memory_space<vmem>>, vector<32x32xbf16>
    %cst_8 = arith.constant dense<0.000000e+00> : vector<8x32xf32>
    %15 = tpu.matmul %13, %14, %cst_8 {dimension_numbers = #tpu.dot_dimension_numbers<[1], [0], [0], [1], [0, 0, 1, 1], [], []>} : vector<8x32xbf16>, vector<32x32xbf16>, vector<8x32xf32> -> vector<8x32xf32>
    %16 = vector.broadcast %7 : vector<1x32xf32> to vector<8x32xf32>
    %17 = arith.addf %15, %16 : vector<8x32xf32>
    %cst_9 = arith.constant 0.000000e+00 : f32
    %18 = vector.broadcast %cst_9 : f32 to vector<8x32xf32>
    %19 = arith.maximumf %17, %18 : vector<8x32xf32>
    %20 = arith.truncf %19 : vector<8x32xf32> to vector<8x32xbf16>
    %c0_10 = arith.constant 0 : index
    %c0_11 = arith.constant 0 : index
    %21 = vector.load %arg4[%c0_10, %c0_11] : memref<32x4xbf16, #tpu.memory_space<vmem>>, vector<32x4xbf16>
    %cst_12 = arith.constant dense<0.000000e+00> : vector<8x4xf32>
    %22 = tpu.matmul %20, %21, %cst_12 {dimension_numbers = #tpu.dot_dimension_numbers<[1], [0], [0], [1], [0, 0, 1, 1], [], []>} : vector<8x32xbf16>, vector<32x4xbf16>, vector<8x4xf32> -> vector<8x4xf32>
    %23 = arith.addf %3, %22 : vector<8x4xf32>
    %24 = vector.broadcast %8 : vector<1x4xf32> to vector<8x4xf32>
    %25 = arith.addf %23, %24 : vector<8x4xf32>
    %c0_13 = arith.constant 0 : index
    %c0_14 = arith.constant 0 : index
    %26 = vector.load %arg6[%c0_13, %c0_14] : memref<8x4xf32, #tpu.memory_space<vmem>>, vector<8x4xf32>
    tpu.vector_store %arg6[%c0_13, %c0_14], %25 {strides = array<i32>} : memref<8x4xf32, #tpu.memory_space<vmem>>, vector<8x4xf32>,
    return
  }
  func.func @transform_0(%arg0: i32) -> (i32, i32) {
    %c0_i32 = arith.constant 0 : i32
    %c0_i32_0 = arith.constant 0 : i32
    return %arg0, %c0_i32 : i32, i32
  }
  func.func @transform_1(%arg0: i32) -> (i32, i32) {
    %c0_i32 = arith.constant 0 : i32
    %c0_i32_0 = arith.constant 0 : i32
    %c0_i32_1 = arith.constant 0 : i32
    return %c0_i32, %c0_i32_0 : i32, i32
  }
  func.func @transform_2(%arg0: i32) -> (i32, i32) {
    %c0_i32 = arith.constant 0 : i32
    %c0_i32_0 = arith.constant 0 : i32
    %c0_i32_1 = arith.constant 0 : i32
    return %c0_i32, %c0_i32_0 : i32, i32
  }
  func.func @transform_3(%arg0: i32) -> (i32, i32) {
    %c0_i32 = arith.constant 0 : i32
    %c0_i32_0 = arith.constant 0 : i32
    %c0_i32_1 = arith.constant 0 : i32
    return %c0_i32, %c0_i32_0 : i32, i32
  }
  func.func @transform_4(%arg0: i32) -> (i32, i32) {
    %c0_i32 = arith.constant 0 : i32
    %c0_i32_0 = arith.constant 0 : i32
    %c0_i32_1 = arith.constant 0 : i32
    return %c0_i32, %c0_i32_0 : i32, i32
  }
  func.func @transform_5(%arg0: i32) -> (i32, i32) {
    %c0_i32 = arith.constant 0 : i32
    %c0_i32_0 = arith.constant 0 : i32
    return %arg0, %c0_i32 : i32, i32
  }
}

</mosaic_0001>

<llo_original>
// kernel: tpu_custom_call.1
$region0: #{tpu_custom_call.1}
  #allocation0 [shape = 'u32[]', space=smem, size = 0x4, offset = 0x4, fixed_abs, tag = 'smem constant byte address 0x4 - core index']
  #allocation1 [shape = 'u32[144,128]{1,0:T(1,128)}', space=vmem, size = 0x12000, scoped, tag = 'internal scratch']
  %s0 = inlined_call_operand.vmem [shape: bf16[8,16], index: 0, kind: input, shape index: {}]
  %s1 = inlined_call_operand.hbm [shape: bf16[16,36], index: 1, kind: input, shape index: {}]
  %s2 = inlined_call_operand.vmem [shape: bf16[32,32], index: 2, kind: input, shape index: {}]
  %s3 = inlined_call_operand.vmem [shape: bf16[32,4], index: 3, kind: input, shape index: {}]
  %s4 = inlined_call_operand.vmem [shape: f32[1,68], index: 4, kind: input, shape index: {}]
  %s5 = inlined_call_operand.vmem [shape: f32[8,4], index: 5, kind: output, shape index: {}]
  %s6 = sld [smem:[#allocation0]]
  $region34: #{tpu_custom_call.1} parent=0
    _
  %s8 = ssub.s32 1, %s6
  %s9 = scalar_select 0, %s8, %s6
  $region1: #{tpu_custom_call.1} parent=0
    #allocation2 [shape = 'u8[4096]{0}', space=vmem, size = 0x1000, scoped, tag = 'input window, operand 1, single buffered']
    #allocation3 [shape = 's32[1]{0}', space=sflag, size = 0x4, scoped, tag = 'scoped memory for tpu_custom_call.1']
    %10 = vsyncpa [#allocation3], 0
    // Predicated region
    $region2: #{tpu_custom_call.1} parent=1 // pred_check
      _
    $region3: #{tpu_custom_call.1} parent=1 // pred_check_branch
      %12 = sbr.rel (0) target = $region5
    $region4: #{tpu_custom_call.1} parent=1 // pred_region
      _
    $region5: #{tpu_custom_call.1} parent=1 // pred_fallthru
      _
    // Predicated region
    $region6: #{tpu_custom_call.1} parent=1 // pred_check
      _
    $region7: #{tpu_custom_call.1} parent=1 // pred_check_branch
      %14 = sbr.rel (0) target = $region9
    $region8: #{tpu_custom_call.1} parent=1 // pred_region
      %s16 = ssub.s32 128, 128
      %17 = vsyncadd [#allocation3], %s16
      %s18 = sshll.u32 [#allocation2], 4
      %s19 = int_to_ptr.vmem [resolvable:$true] %s18
      %24 = dma.hbm_to_vmem [thread:$0]  %s1, 128, %s19, [#allocation3], 64, 64, 4
    $region9: #{tpu_custom_call.1} parent=1 // pred_fallthru
      _
    // Predicated region
    $region10: #{tpu_custom_call.1} parent=1 // pred_check
      _
    $region11: #{tpu_custom_call.1} parent=1 // pred_check_branch
      %26 = sbr.rel (0) target = $region13
    $region12: #{tpu_custom_call.1} parent=1 // pred_region
      _
    $region13: #{tpu_custom_call.1} parent=1 // pred_fallthru
      _
    // Predicated region
    $region14: #{tpu_custom_call.1} parent=1 // pred_check
      _
    $region15: #{tpu_custom_call.1} parent=1 // pred_check_branch
      %28 = sbr.rel (0) target = $region17
    $region16: #{tpu_custom_call.1} parent=1 // pred_region
      _
    $region17: #{tpu_custom_call.1} parent=1 // pred_fallthru
      _
    // Predicated region
    $region18: #{tpu_custom_call.1} parent=1 // pred_check
      _
    $region19: #{tpu_custom_call.1} parent=1 // pred_check_branch
      %30 = sbr.rel (0) target = $region21
    $region20: #{tpu_custom_call.1} parent=1 // pred_region
      _
    $region21: #{tpu_custom_call.1} parent=1 // pred_fallthru
      _
    // Predicated region
    $region22: #{tpu_custom_call.1} parent=1 // pred_check
      _
    $region23: #{tpu_custom_call.1} parent=1 // pred_check_branch
      %32 = sbr.rel (0) target = $region25
    $region24: #{tpu_custom_call.1} parent=1 // pred_region
      %33 = dma.done [#allocation3], 128
    $region25: #{tpu_custom_call.1} parent=1 // pred_fallthru
      _
    %v35 = vld [vmem:[%s0] sm:$0xf]
    %v36 = vld [vmem:[#allocation2] sm:$0xf]
    %v37 = vld [vmem:[#allocation2 + $0x4] sm:$0xf]
    %v40 = vunpack.c.l.b16 %v36
    %v41 = vunpack.c.l.b16 %v37
    %v42 = vpack.c.b16 %v41, %v40
    %vm44 = vcmask 130048
    %v46 = vsel %vm44, %v35, 0
    %48 = vmatprep.subr.bf16.mxu0 0
    %49 = vmatpush1.bf16.msra.mxu0 0
    %50 = vmatprep.subr.bf16.mxu0 0
    %51 = vmatpush1.bf16.msra.mxu0 0
    %52 = vmatprep.subr.bf16.mxu0 0
    %53 = vmatpush1.bf16.msra.mxu0 0
    %54 = vmatprep.subr.bf16.mxu0 0
    %55 = vmatpush1.bf16.msra.mxu0 0
    %56 = vmatprep.subr.bf16.mxu0 0
    %57 = vmatpush1.bf16.msra.mxu0 0
    %58 = vmatprep.subr.bf16.mxu0 0
    %59 = vmatpush1.bf16.msra.mxu0 0
    %60 = vmatprep.subr.bf16.mxu0 0
    %61 = vmatpush1.bf16.msra.mxu0 0
    %62 = vmatprep.subr.bf16.mxu0 0
    %63 = vmatpush1.bf16.msra.mxu0 %v42
    %64 = vmatprep.subr.bf16.mxu0 0
    %65 = vmatpush2.bf16.msra.mxu0 0
    %66 = vmatprep.subr.bf16.mxu0 0
    %67 = vmatpush2.bf16.msra.mxu0 0
    %68 = vmatprep.subr.bf16.mxu0 0
    %69 = vmatpush2.bf16.msra.mxu0 0
    %70 = vmatprep.subr.bf16.mxu0 0
    %71 = vmatpush2.bf16.msra.mxu0 0
    %72 = vmatprep.subr.bf16.mxu0 0
    %73 = vmatpush2.bf16.msra.mxu0 0
    %74 = vmatprep.subr.bf16.mxu0 0
    %75 = vmatpush2.bf16.msra.mxu0 0
    %76 = vmatprep.subr.bf16.mxu0 0
    %77 = vmatpush2.bf16.msra.mxu0 0
    %78 = vmatprep.subr.bf16.mxu0 0
    %79 = vmatpush2.bf16.msra.mxu0 0
    %80 = vmatprep.mubr.bf16.mxu0 0
    %81 = vmatmul.mubr.bf16.gmra.mxu0 %v46
    %v82 = vpop.f32.mrf.mxu0
    %v83 = vadd.f32 0.0, %v82
    %v84 = vpop.f32.mrf.mxu0
    %v85 = vpop.f32.mrf.mxu0
    %v86 = vpop.f32.mrf.mxu0
    %87 = vdwg.mxu0
    %v88 = vld [vmem:[%s4] sm:$0x1]
    %v90 = vlaneseq
    %v91 = vshrl.u32 %v90, 7
    %v92 = vsub.s32 0, %v91
    %v93 = vrot.slane %v88, %v92
    %94 = vrot.lane.b32.xlu0 %v93, 4
    %v95 = vpop.permute.xlu0 %94
    %v97 = vadd.f32 %v83, %v95
    %v98 = vmax.f32 %v97, 0.0
    %v99 = vpack.c.bf16 %v98, %v98
    %v100 = vld [vmem:[%s2] sm:$0xf]
    %v101 = vld [vmem:[%s2 + $0x4] sm:$0xf]
    %v102 = vld [vmem:[%s2 + $0x8] sm:$0xf]
    %v103 = vld [vmem:[%s2 + $0xc] sm:$0xf]
    %105 = vrot.lane.b32.xlu0 %v99, 124
    %v106 = vpop.permute.xlu0 %105
    %v111 = vunpack.c.l.b16 %v100
    %v112 = vunpack.c.l.b16 %v101
    %v113 = vunpack.c.l.b16 %v102
    %v114 = vunpack.c.l.b16 %v103
    %v115 = vpack.c.b16 %v112, %v111
    %v116 = vpack.c.b16 %v114, %v113
    %119 = vrot.lane.b32.xlu0 %v93, 96
    %v120 = vpop.permute.xlu0 %119
    %vm122 = vcmask 261120
    %v124 = vsel %vm122, %v106, 0
    %126 = vmatprep.subr.bf16.mxu0 0
    %127 = vmatpush1.bf16.msra.mxu0 0
    %128 = vmatprep.subr.bf16.mxu0 0
    %129 = vmatpush1.bf16.msra.mxu0 0
    %130 = vmatprep.subr.bf16.mxu0 0
    %131 = vmatpush1.bf16.msra.mxu0 0
    %132 = vmatprep.subr.bf16.mxu0 0
    %133 = vmatpush1.bf16.msra.mxu0 0
    %134 = vmatprep.subr.bf16.mxu0 0
    %135 = vmatpush1.bf16.msra.mxu0 0
    %136 = vmatprep.subr.bf16.mxu0 0
    %137 = vmatpush1.bf16.msra.mxu0 0
    %138 = vmatprep.subr.bf16.mxu0 0
    %139 = vmatpush1.bf16.msra.mxu0 %v116
    %140 = vmatprep.subr.bf16.mxu0 0
    %141 = vmatpush1.bf16.msra.mxu0 %v115
    %142 = vmatprep.subr.bf16.mxu0 0
    %143 = vmatpush2.bf16.msra.mxu0 0
    %144 = vmatprep.subr.bf16.mxu0 0
    %145 = vmatpush2.bf16.msra.mxu0 0
    %146 = vmatprep.subr.bf16.mxu0 0
    %147 = vmatpush2.bf16.msra.mxu0 0
    %148 = vmatprep.subr.bf16.mxu0 0
    %149 = vmatpush2.bf16.msra.mxu0 0
    %150 = vmatprep.subr.bf16.mxu0 0
    %151 = vmatpush2.bf16.msra.mxu0 0
    %152 = vmatprep.subr.bf16.mxu0 0
    %153 = vmatpush2.bf16.msra.mxu0 0
    %154 = vmatprep.subr.bf16.mxu0 0
    %155 = vmatpush2.bf16.msra.mxu0 0
    %156 = vmatprep.subr.bf16.mxu0 0
    %157 = vmatpush2.bf16.msra.mxu0 0
    %158 = vmatprep.mubr.bf16.mxu0 0
    %159 = vmatmul.mubr.bf16.gmra.mxu0 %v124
    %v160 = vpop.f32.mrf.mxu0
    %v161 = vadd.f32 %v120, %v160
    %v162 = vpop.f32.mrf.mxu0
    %v163 = vpop.f32.mrf.mxu0
    %v164 = vpop.f32.mrf.mxu0
    %165 = vdwg.mxu0
    %v166 = vmax.f32 %v161, 0.0
    %v167 = vpack.c.bf16 %v166, %v166
    %v168 = vld [vmem:[%s3] sm:$0xf]
    %v169 = vld [vmem:[%s3 + $0x4] sm:$0xf]
    %v170 = vld [vmem:[%s3 + $0x8] sm:$0xf]
    %v171 = vld [vmem:[%s3 + $0xc] sm:$0xf]
    %v176 = vunpack.c.l.b16 %v168
    %v177 = vunpack.c.l.b16 %v169
    %v178 = vunpack.c.l.b16 %v170
    %v179 = vunpack.c.l.b16 %v171
    %v180 = vpack.c.b16 %v177, %v176
    %v181 = vpack.c.b16 %v179, %v178
    %v185 = vsel %vm122, %v167, 0
    %187 = vmatprep.subr.bf16.mxu0 0
    %188 = vmatpush1.bf16.msra.mxu0 0
    %189 = vmatprep.subr.bf16.mxu0 0
    %190 = vmatpush1.bf16.msra.mxu0 0
    %191 = vmatprep.subr.bf16.mxu0 0
    %192 = vmatpush1.bf16.msra.mxu0 0
    %193 = vmatprep.subr.bf16.mxu0 0
    %194 = vmatpush1.bf16.msra.mxu0 0
    %195 = vmatprep.subr.bf16.mxu0 0
    %196 = vmatpush1.bf16.msra.mxu0 0
    %197 = vmatprep.subr.bf16.mxu0 0
    %198 = vmatpush1.bf16.msra.mxu0 0
    %199 = vmatprep.subr.bf16.mxu0 0
    %200 = vmatpush1.bf16.msra.mxu0 %v181
    %201 = vmatprep.subr.bf16.mxu0 0
    %202 = vmatpush1.bf16.msra.mxu0 %v180
    %203 = vmatprep.subr.bf16.mxu0 0
    %204 = vmatpush2.bf16.msra.mxu0 0
    %205 = vmatprep.subr.bf16.mxu0 0
    %206 = vmatpush2.bf16.msra.mxu0 0
    %207 = vmatprep.subr.bf16.mxu0 0
    %208 = vmatpush2.bf16.msra.mxu0 0
    %209 = vmatprep.subr.bf16.mxu0 0
    %210 = vmatpush2.bf16.msra.mxu0 0
    %211 = vmatprep.subr.bf16.mxu0 0
    %212 = vmatpush2.bf16.msra.mxu0 0
    %213 = vmatprep.subr.bf16.mxu0 0
    %214 = vmatpush2.bf16.msra.mxu0 0
    %215 = vmatprep.subr.bf16.mxu0 0
    %216 = vmatpush2.bf16.msra.mxu0 0
    %217 = vmatprep.subr.bf16.mxu0 0
    %218 = vmatpush2.bf16.msra.mxu0 0
    %219 = vmatprep.mubr.bf16.mxu0 0
    %220 = vmatmul.mubr.bf16.gmra.mxu0 %v185
    %v221 = vpop.f32.mrf.mxu0
    %v222 = vadd.f32 0.0, %v221
    %v223 = vpop.f32.mrf.mxu0
    %v224 = vpop.f32.mrf.mxu0
    %v225 = vpop.f32.mrf.mxu0
    %226 = vdwg.mxu0
    %v227 = vadd.f32 %v83, %v222
    %228 = vrot.lane.b32.xlu0 %v93, 64
    %v229 = vpop.permute.xlu0 %228
    %v231 = vadd.f32 %v227, %v229
    %vm232 = vcmask 31744
    %233 = vst.msk [vmem:[%s5] sm:$0xff] %vm232, %v231
    // Predicated region
    $region26: #{tpu_custom_call.1} parent=1 // pred_check
      _
    $region27: #{tpu_custom_call.1} parent=1 // pred_check_branch
      %235 = sbr.rel (0) target = $region29
    $region28: #{tpu_custom_call.1} parent=1 // pred_region
      _
    $region29: #{tpu_custom_call.1} parent=1 // pred_fallthru
      _
    // Predicated region
    $region30: #{tpu_custom_call.1} parent=1 // pred_check
      _
    $region31: #{tpu_custom_call.1} parent=1 // pred_check_branch
      %237 = sbr.rel (0) target = $region33
    $region32: #{tpu_custom_call.1} parent=1 // pred_region
      _
    $region33: #{tpu_custom_call.1} parent=1 // pred_fallthru
      _
    %238 = vsyncpa [#allocation3], 1

</llo_original>
